<compile_context>
chip_gen: v6e
topology: v6e:2x2x1
jax: 0.10.0
libtpu: 0.0.40
codegen_flags: <defaults>
</compile_context>

<pallas_src>
import functools

import jax
import jax.numpy as jnp
from jax import lax
from jax.experimental import pallas as pl
from jax.experimental.pallas import tpu as pltpu


# ----------------------------------------------------------------------------
# Fused Pallas kernel: [folded conv + identity-attention + fc1]/relu ->
# Eu-keyed softmax attention -> fc2, one batch row per grid step.
# ----------------------------------------------------------------------------
def _psac_fused_kernel(ec_ref, eu_ref, w1_ref, b1_ref, w2a_ref, w2b_ref,
                       b2_ref, o_ref, h_scr, u_scr):
    # ec_ref : (1, S, L*d)  flattened embedded slide window
    # eu_ref : (1, 1, d)    mean user embedding
    # w1_ref : (L*d, d)     fc1 weight with VerticalConv + identity attn folded
    # b1_ref : (1, d)       folded fc1 bias
    # w2a/w2b: (d, R)       fc2 split (Eu half / u_attn half), b2_ref: (1, R)
    # o_ref  : (1, S, R)    logits;  h_scr, u_scr: (S, d) VMEM scratch
    S = ec_ref.shape[1]
    d = eu_ref.shape[2]

    # fc1(cat(conv(Ec), attn(Ec))) collapsed to a single matmul (see header).
    h = jnp.maximum(
        jnp.dot(ec_ref[0], w1_ref[...], preferred_element_type=jnp.float32)
        + b1_ref[...],
        0.0,
    )                                                    # relu(fc1) : (S, d)
    h_scr[...] = h

    eu_row = eu_ref[0]                                   # (1, d)  (lanes)
    eu_col = eu_row.reshape(1, d, 1)                     # Eu index -> sublanes

    # u_attn[s, p] = sum_q softmax_q(Eu[p] * h[s, q]) * h[s, q]
    # One slide position per iteration -> working set is (d, d), never (S,d,d).
    def body(s, carry):
        hrow = h_scr[pl.ds(s, 1), :]                     # (1, d)
        hq = hrow.reshape(1, 1, d)                       # q on lanes
        scores = eu_col * hq                             # (1, d_p, d_q)
        m = jnp.max(scores, axis=-1, keepdims=True)
        e = jnp.exp(scores - m)
        denom = jnp.sum(e, axis=-1, keepdims=True)       # (1, d_p, 1)
        # approx=True would move this fully onto the EUP; kept exact for
        # numerical parity with the PyTorch reference.
        alpha = e * pl.reciprocal(denom, approx=False)   # softmax over q
        u_scr[pl.ds(s, 1), :] = jnp.sum(alpha * hq, axis=-1)   # (1, d_p)
        return carry

    lax.fori_loop(0, S, body, 0)

    # fc2(cat(Eu, u_attn)) == Eu @ W2[:d] + u_attn @ W2[d:] + b2  (no concat).
    o_ref[0] = (
        jnp.dot(eu_row, w2a_ref[...], preferred_element_type=jnp.float32)
        + jnp.dot(u_scr[...], w2b_ref[...], preferred_element_type=jnp.float32)
        + b2_ref[...]
    )


def psac_pallas_call(ec_flat, eu, w_eff, b_eff, w2a, w2b, b2):
    """ec_flat: (B, S, L*d), eu: (B, d) -> logits (B, S, R)."""
    B, S, F = ec_flat.shape
    d = eu.shape[-1]
    R = w2a.shape[1]
    return pl.pallas_call(
        _psac_fused_kernel,
        out_shape=jax.ShapeDtypeStruct((B, S, R), jnp.float32),
        grid=(B,),
        in_specs=[
            pl.BlockSpec((1, S, F), lambda b: (b, 0, 0)),   # Ec (flattened)
            pl.BlockSpec((1, 1, d), lambda b: (b, 0, 0)),   # Eu
            pl.BlockSpec((F, d), lambda b: (0, 0)),         # folded fc1 weight
            pl.BlockSpec((1, d), lambda b: (0, 0)),         # folded fc1 bias
            pl.BlockSpec((d, R), lambda b: (0, 0)),         # fc2 (Eu half)
            pl.BlockSpec((d, R), lambda b: (0, 0)),         # fc2 (u_attn half)
            pl.BlockSpec((1, R), lambda b: (0, 0)),         # fc2 bias
        ],
        out_specs=pl.BlockSpec((1, S, R), lambda b: (b, 0, 0)),
        scratch_shapes=[
            pltpu.VMEM((S, d), jnp.float32),                # h  = relu(fc1)
            pltpu.VMEM((S, d), jnp.float32),                # u_attn
        ],
        compiler_params=pltpu.CompilerParams(
            dimension_semantics=("parallel",)),
    )(ec_flat, eu.reshape(B, 1, d), w_eff, b_eff.reshape(1, d),
      w2a, w2b, b2.reshape(1, R))


# ----------------------------------------------------------------------------
# Parameter folding + forward glue
# ----------------------------------------------------------------------------
def _fold_params(params):
    """Fold VerticalConv (+ the provably-identity AttnNet) into fc1; split fc2."""
    hp = lax.Precision.HIGHEST
    wc_t = params["wc_t"]                        # (L*d, n_kernels)  == Wc^T
    n_kernels = wc_t.shape[1]
    w1_t = params["w1_t"]                        # (n_kernels + L*d, d) == W1^T
    w1a_t = w1_t[:n_kernels, :]                  # conv slice of fc1
    w1b_t = w1_t[n_kernels:, :]                  # attention (== Ec) slice
    d = w1_t.shape[1]
    # fc1(cat(conv, attn)) = Ec_flat @ W_eff + b_eff,
    # with conv = Ec_flat @ Wc^T + bc and attn == Ec_flat (identity AttnNet).
    w_eff = jnp.dot(wc_t, w1a_t, precision=hp) + w1b_t        # (L*d, d)
    b_eff = jnp.dot(params["bc"], w1a_t, precision=hp) + params["b1"]
    w2_t = params["w2_t"]                        # (2d, R) == W2^T
    return w_eff, b_eff, w2_t[:d, :], w2_t[d:, :], params["b2"]


def psac_forward(su, params):
    """PSAC_gen.forward: su (B, S, L) int ids -> logits (B, S, input_types)."""
    emb = params["emb"]
    B, S, L = su.shape
    d = emb.shape[1]
    # Embedding gather stays in plain JAX (glue); Eu is the mean of the same
    # embeddings, so compute it from Ec instead of a second gather.
    Ec = emb[su]                                  # (B, S, L, d)
    Eu = jnp.mean(Ec, axis=(1, 2))                # == encoder(su.reshape(B,-1)).mean(1)
    w_eff, b_eff, w2a, w2b, b2 = _fold_params(params)
    return psac_pallas_call(Ec.reshape(B, S, L * d), Eu, w_eff, b_eff,
                            w2a, w2b, b2)


# ----------------------------------------------------------------------------
# Pure-jnp reference (self-check only) and parameter init
# ----------------------------------------------------------------------------
def psac_reference(su, params):
    """Straight-line jnp port of the PyTorch module, full attention path.

    Attention uses the natural (b, s, i, j) indexing; it equals the module
    for B == 1 and is output-equivalent for any B because the softmax and the
    weighted sum share the j axis (the branch reduces to Ec)."""
    hp = lax.Precision.HIGHEST
    emb = params["emb"]
    B, S, L = su.shape
    d = emb.shape[1]
    Ec = emb[su]
    Eu = jnp.mean(emb[su.reshape(B, -1)], axis=1)
    conv = jnp.einsum("bsf,fn->bsn", Ec.reshape(B, S, L * d), params["wc_t"],
                      precision=hp) + params["bc"]
    wi = jnp.einsum("bsld,de->bsle", Ec, params["wi_t"], precision=hp)
    wj = jnp.einsum("bsld,de->bsle", Ec, params["wj_t"], precision=hp)
    ec_add = wi[:, :, :, None, :] + wj[:, :, None, :, :]        # (B,S,L,L,d)
    s_ij = jnp.einsum("bsijd,d->bsij", jnp.tanh(ec_add), params["v"][0],
                      precision=hp)
    alpha = jax.nn.softmax(s_ij, axis=-1)                       # softmax over j
    attn = (Ec * jnp.sum(alpha, axis=-1)[..., None]).reshape(B, S, L * d)
    fc1_in = jnp.concatenate([conv, attn], axis=-1)
    h = jax.nn.relu(jnp.einsum("bsf,fd->bsd", fc1_in, params["w1_t"],
                               precision=hp) + params["b1"])
    scores = Eu[:, None, :, None] * h[:, :, None, :]            # (B,S,p,q)
    a2 = jax.nn.softmax(scores, axis=-1)
    u_attn = jnp.sum(a2 * h[:, :, None, :], axis=-1)            # (B,S,d)
    return (jnp.einsum("bd,dr->br", Eu, params["w2_t"][:d], precision=hp)[:, None]
            + jnp.einsum("bsd,dr->bsr", u_attn, params["w2_t"][d:], precision=hp)
            + params["b2"])


def init_params(key, input_types, d, L, n_kernels):
    ks = jax.random.split(key, 8)
    F = n_kernels + L * d
    params = {
        # Embedding: normal(0, 1/d) per _init_para.
        "emb": jax.random.normal(ks[0], (input_types, d), jnp.float32) * (1.0 / d),
        # VerticalConv weights (n_kernels, L*d) stored transposed.
        "wc_t": jnp.transpose(
            jax.random.normal(ks[1], (n_kernels, L * d), jnp.float32)
            * (1.0 / (L * d) ** 0.5)),
        "bc": jnp.zeros((n_kernels,), jnp.float32),
        # AttnNet params (Linear normal(0,1), no bias).  Provably inert: the
        # module's softmax(dim=-2)+sum(dim=-2) makes the branch the identity.
        "wi_t": jnp.transpose(jax.random.normal(ks[2], (d, d), jnp.float32)),
        "wj_t": jnp.transpose(jax.random.normal(ks[3], (d, d), jnp.float32)),
        "v": jax.random.normal(ks[4], (1, d), jnp.float32),
        # LSTFcNet: fc1 (d, F) + zero bias, fc2 (R, 2d) + zero bias.
        "w1_t": jnp.transpose(jax.random.normal(ks[5], (d, F), jnp.float32)),
        "b1": jnp.zeros((d,), jnp.float32),
        "w2_t": jnp.transpose(
            jax.random.normal(ks[6], (input_types, 2 * d), jnp.float32)),
        "b2": jnp.zeros((input_types,), jnp.float32),
    }
    return params, ks[7]


if __name__ == "__main__":
    # Small synthetic config: input_types=32, d=8, L=3, n_kernels=16,
    # batch=2, slide_len=4.
    B, S, L, d = 2, 4, 3, 8
    n_kernels, input_types = 16, 32

    key = jax.random.PRNGKey(0)
    params, dkey = init_params(key, input_types, d, L, n_kernels)
    su = jax.random.randint(dkey, (B, S, L), 0, input_types, dtype=jnp.int32)

    fwd = jax.jit(functools.partial(psac_forward, params=params))
    logits = fwd(su)
    jax.block_until_ready(logits)

    assert logits.shape == (B, S, input_types), logits.shape
    assert logits.dtype == jnp.float32
    assert bool(jnp.all(jnp.isfinite(logits)))

    # Self-check against the straight-line jnp port of the module.
    ref = psac_reference(su, params)
    assert bool(jnp.allclose(logits, ref, rtol=2e-2, atol=2e-2)), (
        float(jnp.max(jnp.abs(logits - ref))))

    print("KERNEL_OK")
</pallas_src>

<mosaic_0001>
module attributes {stable_mosaic.version = 11 : i64} {
  func.func @_psac_fused_kernel(%arg0: i32, %arg1: memref<1x4x24xf32, #tpu.memory_space<vmem>>, %arg2: memref<1x1x8xf32, #tpu.memory_space<vmem>>, %arg3: memref<24x8xf32, #tpu.memory_space<vmem>>, %arg4: memref<1x8xf32, #tpu.memory_space<vmem>>, %arg5: memref<8x32xf32, #tpu.memory_space<vmem>>, %arg6: memref<8x32xf32, #tpu.memory_space<vmem>>, %arg7: memref<1x32xf32, #tpu.memory_space<vmem>>, %arg8: memref<1x4x32xf32, #tpu.memory_space<vmem>>, %arg9: memref<4x8xf32, #tpu.memory_space<vmem>>, %arg10: memref<4x8xf32, #tpu.memory_space<vmem>>) attributes {dimension_semantics = [#tpu.dimension_semantics<parallel>], iteration_bounds = array<i64: 2>, scalar_prefetch = 0 : i64, scratch_operands = 2 : i64, tpu.core_type = #tpu.core_type<tc>, window_params = [{transform_indices = @transform_0, window_bounds = array<i64: 1, 4, 24>}, {transform_indices = @transform_1, window_bounds = array<i64: 1, 1, 8>}, {pipeline_mode = #tpu.pipeline_mode<synchronous>, transform_indices = @transform_2, window_bounds = array<i64: 24, 8>}, {pipeline_mode = #tpu.pipeline_mode<synchronous>, transform_indices = @transform_3, window_bounds = array<i64: 1, 8>}, {pipeline_mode = #tpu.pipeline_mode<synchronous>, transform_indices = @transform_4, window_bounds = array<i64: 8, 32>}, {pipeline_mode = #tpu.pipeline_mode<synchronous>, transform_indices = @transform_5, window_bounds = array<i64: 8, 32>}, {pipeline_mode = #tpu.pipeline_mode<synchronous>, transform_indices = @transform_6, window_bounds = array<i64: 1, 32>}, {transform_indices = @transform_7, window_bounds = array<i64: 1, 4, 32>}]} {
    %c0 = arith.constant 0 : index
    %c0_0 = arith.constant 0 : index
    %c0_1 = arith.constant 0 : index
    %0 = vector.load %arg1[%c0, %c0_0, %c0_1] : memref<1x4x24xf32, #tpu.memory_space<vmem>>, vector<1x4x24xf32>
    %1 = vector.shape_cast %0 : vector<1x4x24xf32> to vector<4x24xf32>
    %c0_2 = arith.constant 0 : index
    %c0_3 = arith.constant 0 : index
    %2 = vector.load %arg3[%c0_2, %c0_3] : memref<24x8xf32, #tpu.memory_space<vmem>>, vector<24x8xf32>
    %cst = arith.constant dense<0.000000e+00> : vector<4x8xf32>
    %3 = tpu.matmul %1, %2, %cst {dimension_numbers = #tpu.dot_dimension_numbers<[1], [0], [0], [1], [0, 0, 1, 1], [], []>} : vector<4x24xf32>, vector<24x8xf32>, vector<4x8xf32> -> vector<4x8xf32>
    %c0_4 = arith.constant 0 : index
    %c0_5 = arith.constant 0 : index
    %4 = vector.load %arg4[%c0_4, %c0_5] : memref<1x8xf32, #tpu.memory_space<vmem>>, vector<1x8xf32>
    %5 = vector.broadcast %4 : vector<1x8xf32> to vector<4x8xf32>
    %6 = arith.addf %3, %5 : vector<4x8xf32>
    %cst_6 = arith.constant 0.000000e+00 : f32
    %7 = vector.broadcast %cst_6 : f32 to vector<4x8xf32>
    %8 = arith.maximumf %6, %7 : vector<4x8xf32>
    %c0_7 = arith.constant 0 : index
    %c0_8 = arith.constant 0 : index
    %9 = vector.load %arg9[%c0_7, %c0_8] : memref<4x8xf32, #tpu.memory_space<vmem>>, vector<4x8xf32>
    tpu.vector_store %arg9[%c0_7, %c0_8], %8 {strides = array<i32>} : memref<4x8xf32, #tpu.memory_space<vmem>>, vector<4x8xf32>,
    %c0_9 = arith.constant 0 : index
    %c0_10 = arith.constant 0 : index
    %c0_11 = arith.constant 0 : index
    %10 = vector.load %arg2[%c0_9, %c0_10, %c0_11] : memref<1x1x8xf32, #tpu.memory_space<vmem>>, vector<1x1x8xf32>
    %11 = vector.shape_cast %10 : vector<1x1x8xf32> to vector<1x8xf32>
    %12 = vector.shape_cast %11 : vector<1x8xf32> to vector<1x8x1xf32>
    %c0_i32 = arith.constant 0 : i32
    %c4_i32 = arith.constant 4 : i32
    %13 = arith.addi %c0_i32, %c4_i32 : i32
    %c1_i32 = arith.constant 1 : i32
    scf.for %arg11 = %c0_i32 to %13 step %c1_i32  : i32 {
      %27 = arith.index_cast %arg11 : i32 to index
      %c0_26 = arith.constant 0 : index
      %28 = vector.load %arg9[%27, %c0_26] : memref<4x8xf32, #tpu.memory_space<vmem>>, vector<1x8xf32>
      %29 = vector.shape_cast %28 : vector<1x8xf32> to vector<1x1x8xf32>
      %30 = vector.broadcast %12 : vector<1x8x1xf32> to vector<1x8x8xf32>
      %31 = vector.broadcast %29 : vector<1x1x8xf32> to vector<1x8x8xf32>
      %32 = arith.mulf %30, %31 : vector<1x8x8xf32>
      %cst_27 = arith.constant dense<0xFF800000> : vector<1x8xf32>
      %33 = vector.multi_reduction <maximumf>, %32, %cst_27 [2] : vector<1x8x8xf32> to vector<1x8xf32>
      %34 = vector.shape_cast %33 : vector<1x8xf32> to vector<1x8x1xf32>
      %35 = vector.broadcast %34 : vector<1x8x1xf32> to vector<1x8x8xf32>
      %36 = arith.subf %32, %35 : vector<1x8x8xf32>
      %37 = math.exp %36 : vector<1x8x8xf32>
      %cst_28 = arith.constant dense<0.000000e+00> : vector<1x8xf32>
      %38 = vector.multi_reduction <add>, %37, %cst_28 [2] : vector<1x8x8xf32> to vector<1x8xf32>
      %39 = vector.shape_cast %38 : vector<1x8xf32> to vector<1x8x1xf32>
      %40 = tpu.reciprocal %39 : vector<1x8x1xf32> -> vector<1x8x1xf32>
      %41 = vector.broadcast %40 : vector<1x8x1xf32> to vector<1x8x8xf32>
      %42 = arith.mulf %37, %41 : vector<1x8x8xf32>
      %43 = vector.broadcast %29 : vector<1x1x8xf32> to vector<1x8x8xf32>
      %44 = arith.mulf %42, %43 : vector<1x8x8xf32>
      %cst_29 = arith.constant dense<0.000000e+00> : vector<1x8xf32>
      %45 = vector.multi_reduction <add>, %44, %cst_29 [2] : vector<1x8x8xf32> to vector<1x8xf32>
      %46 = arith.index_cast %arg11 : i32 to index
      %c0_30 = arith.constant 0 : index
      %47 = vector.load %arg10[%46, %c0_30] : memref<4x8xf32, #tpu.memory_space<vmem>>, vector<1x8xf32>
      tpu.vector_store %arg10[%46, %c0_30], %45 {strides = array<i32>} : memref<4x8xf32, #tpu.memory_space<vmem>>, vector<1x8xf32>,
    }
    %c4_i32_12 = arith.constant 4 : i32
    %c0_13 = arith.constant 0 : index
    %c0_14 = arith.constant 0 : index
    %14 = vector.load %arg5[%c0_13, %c0_14] : memref<8x32xf32, #tpu.memory_space<vmem>>, vector<8x32xf32>
    %cst_15 = arith.constant dense<0.000000e+00> : vector<1x32xf32>
    %15 = tpu.matmul %11, %14, %cst_15 {dimension_numbers = #tpu.dot_dimension_numbers<[1], [0], [0], [1], [0, 0, 1, 1], [], []>} : vector<1x8xf32>, vector<8x32xf32>, vector<1x32xf32> -> vector<1x32xf32>
    %c0_16 = arith.constant 0 : index
    %c0_17 = arith.constant 0 : index
    %16 = vector.load %arg10[%c0_16, %c0_17] : memref<4x8xf32, #tpu.memory_space<vmem>>, vector<4x8xf32>
    %c0_18 = arith.constant 0 : index
    %c0_19 = arith.constant 0 : index
    %17 = vector.load %arg6[%c0_18, %c0_19] : memref<8x32xf32, #tpu.memory_space<vmem>>, vector<8x32xf32>
    %cst_20 = arith.constant dense<0.000000e+00> : vector<4x32xf32>
    %18 = tpu.matmul %16, %17, %cst_20 {dimension_numbers = #tpu.dot_dimension_numbers<[1], [0], [0], [1], [0, 0, 1, 1], [], []>} : vector<4x8xf32>, vector<8x32xf32>, vector<4x32xf32> -> vector<4x32xf32>
    %19 = vector.broadcast %15 : vector<1x32xf32> to vector<4x32xf32>
    %20 = arith.addf %19, %18 : vector<4x32xf32>
    %c0_21 = arith.constant 0 : index
    %c0_22 = arith.constant 0 : index
    %21 = vector.load %arg7[%c0_21, %c0_22] : memref<1x32xf32, #tpu.memory_space<vmem>>, vector<1x32xf32>
    %22 = vector.broadcast %21 : vector<1x32xf32> to vector<4x32xf32>
    %23 = arith.addf %20, %22 : vector<4x32xf32>
    %c0_23 = arith.constant 0 : index
    %c0_24 = arith.constant 0 : index
    %c0_25 = arith.constant 0 : index
    %24 = vector.load %arg8[%c0_23, %c0_24, %c0_25] : memref<1x4x32xf32, #tpu.memory_space<vmem>>, vector<1x4x32xf32>
    %25 = vector.shape_cast %24 : vector<1x4x32xf32> to vector<4x32xf32>
    %26 = vector.shape_cast %23 : vector<4x32xf32> to vector<1x4x32xf32>
    tpu.vector_store %arg8[%c0_23, %c0_24, %c0_25], %26 {strides = array<i32>} : memref<1x4x32xf32, #tpu.memory_space<vmem>>, vector<1x4x32xf32>,
    return
  }
  func.func @transform_0(%arg0: i32) -> (i32, i32, i32) {
    %c0_i32 = arith.constant 0 : i32
    %c0_i32_0 = arith.constant 0 : i32
    %c0_i32_1 = arith.constant 0 : i32
    return %arg0, %c0_i32, %c0_i32_0 : i32, i32, i32
  }
  func.func @transform_1(%arg0: i32) -> (i32, i32, i32) {
    %c0_i32 = arith.constant 0 : i32
    %c0_i32_0 = arith.constant 0 : i32
    %c0_i32_1 = arith.constant 0 : i32
    return %arg0, %c0_i32, %c0_i32_0 : i32, i32, i32
  }
  func.func @transform_2(%arg0: i32) -> (i32, i32) {
    %c0_i32 = arith.constant 0 : i32
    %c0_i32_0 = arith.constant 0 : i32
    %c0_i32_1 = arith.constant 0 : i32
    return %c0_i32, %c0_i32_0 : i32, i32
  }
  func.func @transform_3(%arg0: i32) -> (i32, i32) {
    %c0_i32 = arith.constant 0 : i32
    %c0_i32_0 = arith.constant 0 : i32
    %c0_i32_1 = arith.constant 0 : i32
    return %c0_i32, %c0_i32_0 : i32, i32
  }
  func.func @transform_4(%arg0: i32) -> (i32, i32) {
    %c0_i32 = arith.constant 0 : i32
    %c0_i32_0 = arith.constant 0 : i32
    %c0_i32_1 = arith.constant 0 : i32
    return %c0_i32, %c0_i32_0 : i32, i32
  }
  func.func @transform_5(%arg0: i32) -> (i32, i32) {
    %c0_i32 = arith.constant 0 : i32
    %c0_i32_0 = arith.constant 0 : i32
    %c0_i32_1 = arith.constant 0 : i32
    return %c0_i32, %c0_i32_0 : i32, i32
  }
  func.func @transform_6(%arg0: i32) -> (i32, i32) {
    %c0_i32 = arith.constant 0 : i32
    %c0_i32_0 = arith.constant 0 : i32
    %c0_i32_1 = arith.constant 0 : i32
    return %c0_i32, %c0_i32_0 : i32, i32
  }
  func.func @transform_7(%arg0: i32) -> (i32, i32, i32) {
    %c0_i32 = arith.constant 0 : i32
    %c0_i32_0 = arith.constant 0 : i32
    %c0_i32_1 = arith.constant 0 : i32
    return %arg0, %c0_i32, %c0_i32_0 : i32, i32, i32
  }
}

</mosaic_0001>

<llo_original>
// kernel: psac_forward.1
$region0: #{psac_forward.1}
  #allocation0 [shape = 'u32[]', space=smem, size = 0x4, offset = 0x4, fixed_abs, tag = 'smem constant byte address 0x4 - core index']
  #allocation1 [shape = 'u32[144,128]{1,0:T(1,128)}', space=vmem, size = 0x12000, scoped, tag = 'internal scratch']
  #allocation2 [shape = 'f32[4,8]{1,0:T(4,128)}', space=vmem, size = 0x800, scoped, tag = 'scratch operand']
  #allocation3 [shape = 'f32[4,8]{1,0:T(4,128)}', space=vmem, size = 0x800, scoped, tag = 'scratch operand']
  %s0 = inlined_call_operand.vmem [shape: f32[2,4,24], index: 0, kind: input, shape index: {}]
  %s1 = inlined_call_operand.vmem [shape: f32[2,1,8], index: 1, kind: input, shape index: {}]
  %s2 = inlined_call_operand.vmem [shape: f32[24,8], index: 2, kind: input, shape index: {}]
  %s3 = inlined_call_operand.vmem [shape: f32[1,8], index: 3, kind: input, shape index: {}]
  %s4 = inlined_call_operand.vmem [shape: f32[8,32], index: 4, kind: input, shape index: {}]
  %s5 = inlined_call_operand.vmem [shape: f32[8,32], index: 5, kind: input, shape index: {}]
  %s6 = inlined_call_operand.vmem [shape: f32[1,32], index: 6, kind: input, shape index: {}]
  %s7 = inlined_call_operand.hbm [shape: f32[2,4,32], index: 7, kind: output, shape index: {}]
  %s8 = sld [smem:[#allocation0]]
  $region68: #{psac_forward.1} parent=0
    _
  %s10 = ssub.s32 1, %s8
  %s11 = scalar_select 0, %s10, %s8
  $region1: #{psac_forward.1} parent=0
    #allocation4 [shape = 'u8[4096]{0}', space=vmem, size = 0x1000, scoped, tag = 'output window, operand 0']
    #allocation5 [shape = 's32[2]{0}', space=sflag, size = 0x8, scoped, tag = 'scoped memory for psac_forward.1']
    %12 = vsyncpa [#allocation5], 0
    %s13 = scalar_lea.sflag [#allocation5], 1
    %14 = vsyncpa %s13, 0
    loop: start=0, step=1, limit=4
    $region2: #{psac_forward.1} parent=1 // loop_pre_header
      _
    $region3: #{psac_forward.1} parent=1 // loop_header
      %s16 = sphi 0, %s20
      %p17 = scmp.ge.s32.totalorder %s16, 4
      %s26 = sphi 0, %s28
      %s29 = sphi 0, %s26
      %s30 = sphi 0, %s29
      %s46 = sphi 0, %s30
      %s52 = sphi 0, %s54
      %s55 = sphi 0, %s52
      %s56 = sphi 0, %s55
      %s72 = sphi 0, %s56
      %s76 = sphi 0, %s76
      %s78 = sphi 0, %s76
      %s79 = sphi 0, %s78
      %s93 = sphi 0, %s79
      %s97 = sphi 0, %s97
      %s99 = sphi 0, %s97
      %s100 = sphi 0, %s99
      %s114 = sphi 0, %s100
      %s118 = sphi 0, %s118
      %s120 = sphi 0, %s118
      %s121 = sphi 0, %s120
      %s135 = sphi 0, %s121
      %s139 = sphi 0, %s139
      %s141 = sphi 0, %s139
      %s142 = sphi 0, %s141
      %s156 = sphi 0, %s142
      %s160 = sphi 0, %s160
      %s162 = sphi 0, %s160
      %s163 = sphi 0, %s162
      %s177 = sphi 0, %s163
      %s183 = sphi 0, %s185
      %s186 = sphi 0, %s183
      %s187 = sphi 0, %s186
      %s203 = sphi 0, %s187
    $region4: #{psac_forward.1} parent=1 // loop_header_branch
      %19 = sbr.rel (%p17) target = $region8
    $region5: #{psac_forward.1} parent=1 // loop_body
      %s21 = ssub.s32 %s16, 1
      %s22 = ssub.s32 %s16, 2
      %s23 = sadd.s32 %s16, 1
      %s24 = ssub.s32 %s16, %s23
      %p25 = scmp.eq.s32.totalorder %s24, 0
      %s27 = sadd.s32 %s26, 1
      %s28 = scalar_select %p25, %s26, %s27
      %p31 = pneg %p25
      %p32 = scmp.eq.s32.totalorder %s16, 1
      %p33 = por %p31, %p32
      %p34 = scmp.ne.s32.totalorder %s26, %s29
      %p35 = scmp.eq.s32.totalorder %s16, 0
      %p36 = por %p34, %p35
      %p37 = scmp.ne.s32.totalorder %s26, %s29
      %p38 = scmp.eq.s32.totalorder %s21, 1
      %p39 = por %p37, %p38
      %p40 = scmp.ne.s32.totalorder %s29, %s30
      %p41 = scmp.eq.s32.totalorder %s21, 0
      %p42 = por %p40, %p41
      %p43 = scmp.ne.s32.totalorder %s29, %s30
      %p44 = scmp.eq.s32.totalorder %s22, 1
      %p45 = por %p43, %p44
      %p47 = scmp.ne.s32.totalorder %s30, %s46
      %p48 = scmp.eq.s32.totalorder %s22, 0
      %p49 = por %p47, %p48
      %s50 = ssub.s32 %s16, %s23
      %p51 = scmp.eq.s32.totalorder %s50, 0
      %s53 = sadd.s32 %s52, 1
      %s54 = scalar_select %p51, %s52, %s53
      %p57 = pneg %p51
      %p58 = scmp.eq.s32.totalorder %s16, 1
      %p59 = por %p57, %p58
      %p60 = scmp.ne.s32.totalorder %s52, %s55
      %p61 = scmp.eq.s32.totalorder %s16, 0
      %p62 = por %p60, %p61
      %p63 = scmp.ne.s32.totalorder %s52, %s55
      %p64 = scmp.eq.s32.totalorder %s21, 1
      %p65 = por %p63, %p64
      %p66 = scmp.ne.s32.totalorder %s55, %s56
      %p67 = scmp.eq.s32.totalorder %s21, 0
      %p68 = por %p66, %p67
      %p69 = scmp.ne.s32.totalorder %s55, %s56
      %p70 = scmp.eq.s32.totalorder %s22, 1
      %p71 = por %p69, %p70
      %p73 = scmp.ne.s32.totalorder %s56, %s72
      %p74 = scmp.eq.s32.totalorder %s22, 0
      %p75 = por %p73, %p74
      %s77 = sadd.s32 %s76, 1
      %p80 = scmp.eq.s32.totalorder %s16, 1
      %p81 = scmp.ne.s32.totalorder %s76, %s78
      %p82 = scmp.eq.s32.totalorder %s16, 0
      %p83 = por %p81, %p82
      %p84 = scmp.ne.s32.totalorder %s76, %s78
      %p85 = scmp.eq.s32.totalorder %s21, 1
      %p86 = por %p84, %p85
      %p87 = scmp.ne.s32.totalorder %s78, %s79
      %p88 = scmp.eq.s32.totalorder %s21, 0
      %p89 = por %p87, %p88
      %p90 = scmp.ne.s32.totalorder %s78, %s79
      %p91 = scmp.eq.s32.totalorder %s22, 1
      %p92 = por %p90, %p91
      %p94 = scmp.ne.s32.totalorder %s79, %s93
      %p95 = scmp.eq.s32.totalorder %s22, 0
      %p96 = por %p94, %p95
      %s98 = sadd.s32 %s97, 1
      %p101 = scmp.eq.s32.totalorder %s16, 1
      %p102 = scmp.ne.s32.totalorder %s97, %s99
      %p103 = scmp.eq.s32.totalorder %s16, 0
      %p104 = por %p102, %p103
      %p105 = scmp.ne.s32.totalorder %s97, %s99
      %p106 = scmp.eq.s32.totalorder %s21, 1
      %p107 = por %p105, %p106
      %p108 = scmp.ne.s32.totalorder %s99, %s100
      %p109 = scmp.eq.s32.totalorder %s21, 0
      %p110 = por %p108, %p109
      %p111 = scmp.ne.s32.totalorder %s99, %s100
      %p112 = scmp.eq.s32.totalorder %s22, 1
      %p113 = por %p111, %p112
      %p115 = scmp.ne.s32.totalorder %s100, %s114
      %p116 = scmp.eq.s32.totalorder %s22, 0
      %p117 = por %p115, %p116
      %s119 = sadd.s32 %s118, 1
      %p122 = scmp.eq.s32.totalorder %s16, 1
      %p123 = scmp.ne.s32.totalorder %s118, %s120
      %p124 = scmp.eq.s32.totalorder %s16, 0
      %p125 = por %p123, %p124
      %p126 = scmp.ne.s32.totalorder %s118, %s120
      %p127 = scmp.eq.s32.totalorder %s21, 1
      %p128 = por %p126, %p127
      %p129 = scmp.ne.s32.totalorder %s120, %s121
      %p130 = scmp.eq.s32.totalorder %s21, 0
      %p131 = por %p129, %p130
      %p132 = scmp.ne.s32.totalorder %s120, %s121
      %p133 = scmp.eq.s32.totalorder %s22, 1
      %p134 = por %p132, %p133
      %p136 = scmp.ne.s32.totalorder %s121, %s135
      %p137 = scmp.eq.s32.totalorder %s22, 0
      %p138 = por %p136, %p137
      %s140 = sadd.s32 %s139, 1
      %p143 = scmp.eq.s32.totalorder %s16, 1
      %p144 = scmp.ne.s32.totalorder %s139, %s141
      %p145 = scmp.eq.s32.totalorder %s16, 0
      %p146 = por %p144, %p145
      %p147 = scmp.ne.s32.totalorder %s139, %s141
      %p148 = scmp.eq.s32.totalorder %s21, 1
      %p149 = por %p147, %p148
      %p150 = scmp.ne.s32.totalorder %s141, %s142
      %p151 = scmp.eq.s32.totalorder %s21, 0
      %p152 = por %p150, %p151
      %p153 = scmp.ne.s32.totalorder %s141, %s142
      %p154 = scmp.eq.s32.totalorder %s22, 1
      %p155 = por %p153, %p154
      %p157 = scmp.ne.s32.totalorder %s142, %s156
      %p158 = scmp.eq.s32.totalorder %s22, 0
      %p159 = por %p157, %p158
      %s161 = sadd.s32 %s160, 1
      %p164 = scmp.eq.s32.totalorder %s16, 1
      %p165 = scmp.ne.s32.totalorder %s160, %s162
      %p166 = scmp.eq.s32.totalorder %s16, 0
      %p167 = por %p165, %p166
      %p168 = scmp.ne.s32.totalorder %s160, %s162
      %p169 = scmp.eq.s32.totalorder %s21, 1
      %p170 = por %p168, %p169
      %p171 = scmp.ne.s32.totalorder %s162, %s163
      %p172 = scmp.eq.s32.totalorder %s21, 0
      %p173 = por %p171, %p172
      %p174 = scmp.ne.s32.totalorder %s162, %s163
      %p175 = scmp.eq.s32.totalorder %s22, 1
      %p176 = por %p174, %p175
      %p178 = scmp.ne.s32.totalorder %s163, %s177
      %p179 = scmp.eq.s32.totalorder %s22, 0
      %p180 = por %p178, %p179
      %s181 = ssub.s32 %s16, %s23
      %p182 = scmp.eq.s32.totalorder %s181, 0
      %s184 = sadd.s32 %s183, 1
      %s185 = scalar_select %p182, %s183, %s184
      %p188 = pneg %p182
      %p189 = scmp.eq.s32.totalorder %s16, 1
      %p190 = por %p188, %p189
      %p191 = scmp.ne.s32.totalorder %s183, %s186
      %p192 = scmp.eq.s32.totalorder %s16, 0
      %p193 = por %p191, %p192
      %p194 = scmp.ne.s32.totalorder %s183, %s186
      %p195 = scmp.eq.s32.totalorder %s21, 1
      %p196 = por %p194, %p195
      %p197 = scmp.ne.s32.totalorder %s186, %s187
      %p198 = scmp.eq.s32.totalorder %s21, 0
      %p199 = por %p197, %p198
      %p200 = scmp.ne.s32.totalorder %s186, %s187
      %p201 = scmp.eq.s32.totalorder %s22, 1
      %p202 = por %p200, %p201
      %p204 = scmp.ne.s32.totalorder %s187, %s203
      %p205 = scmp.eq.s32.totalorder %s22, 0
      %p206 = por %p204, %p205
      %p207 = scmp.le.s32.totalorder 1, %s16
      %p208 = scmp.lt.s32.totalorder %s16, 3
      %p209 = pnand %p207, %p208
      %p210 = pneg %p209
      // Predicated region
      $region9: #{psac_forward.1} parent=5 // pred_check
        _
      $region10: #{psac_forward.1} parent=5 // pred_check_branch
        %212 = sbr.rel (%p209) target = $region12
      $region11: #{psac_forward.1} parent=5 // pred_region
        %s213 = ssub.s32 %s16, 1
        // Predicated region
        $region13: #{psac_forward.1} parent=11 // pred_check
          %p214 = pneg %p89
        $region14: #{psac_forward.1} parent=11 // pred_check_branch
          %216 = sbr.rel (%p214) target = $region16
        $region15: #{psac_forward.1} parent=11 // pred_region
          _
        $region16: #{psac_forward.1} parent=11 // pred_fallthru
          _
        // Predicated region
        $region17: #{psac_forward.1} parent=11 // pred_check
          %p217 = pneg %p110
        $region18: #{psac_forward.1} parent=11 // pred_check_branch
          %219 = sbr.rel (%p217) target = $region20
        $region19: #{psac_forward.1} parent=11 // pred_region
          _
        $region20: #{psac_forward.1} parent=11 // pred_fallthru
          _
        // Predicated region
        $region21: #{psac_forward.1} parent=11 // pred_check
          %p220 = pneg %p131
        $region22: #{psac_forward.1} parent=11 // pred_check_branch
          %222 = sbr.rel (%p220) target = $region24
        $region23: #{psac_forward.1} parent=11 // pred_region
          _
        $region24: #{psac_forward.1} parent=11 // pred_fallthru
          _
        // Predicated region
        $region25: #{psac_forward.1} parent=11 // pred_check
          %p223 = pneg %p152
        $region26: #{psac_forward.1} parent=11 // pred_check_branch
          %225 = sbr.rel (%p223) target = $region28
        $region27: #{psac_forward.1} parent=11 // pred_region
          _
        $region28: #{psac_forward.1} parent=11 // pred_fallthru
          _
        // Predicated region
        $region29: #{psac_forward.1} parent=11 // pred_check
          %p226 = pneg %p173
        $region30: #{psac_forward.1} parent=11 // pred_check_branch
          %228 = sbr.rel (%p226) target = $region32
        $region31: #{psac_forward.1} parent=11 // pred_region
          _
        $region32: #{psac_forward.1} parent=11 // pred_fallthru
          _
      $region12: #{psac_forward.1} parent=5 // pred_fallthru
        _
      %p229 = scmp.lt.s32.totalorder %s16, 2
      // Predicated region
      $region33: #{psac_forward.1} parent=5 // pred_check
        %p230 = pneg %p229
      $region34: #{psac_forward.1} parent=5 // pred_check_branch
        %232 = sbr.rel (%p230) target = $region36
      $region35: #{psac_forward.1} parent=5 // pred_region
        // Predicated region
        $region37: #{psac_forward.1} parent=35 // pred_check
          %p233 = pneg %p36
        $region38: #{psac_forward.1} parent=35 // pred_check_branch
          %235 = sbr.rel (%p233) target = $region40
        $region39: #{psac_forward.1} parent=35 // pred_region
          %p236 = scmp.lt.s32.totalorder %s16, 1
          %s237 = scalar_select %p236, %s16, 1
          %s238 = smul.addr %s237, 4
          %s239 = scalar_lea.vmem %s0, %s238
        $region40: #{psac_forward.1} parent=35 // pred_fallthru
          _
        // Predicated region
        $region41: #{psac_forward.1} parent=35 // pred_check
          %p240 = pneg %p62
        $region42: #{psac_forward.1} parent=35 // pred_check_branch
          %242 = sbr.rel (%p240) target = $region44
        $region43: #{psac_forward.1} parent=35 // pred_region
          %p243 = scmp.lt.s32.totalorder %s16, 1
          %s244 = scalar_select %p243, %s16, 1
          %s245 = scalar_lea.vmem %s1, %s244
        $region44: #{psac_forward.1} parent=35 // pred_fallthru
          _
      $region36: #{psac_forward.1} parent=5 // pred_fallthru
        _
      %p246 = scmp.le.s32.totalorder 1, %s16
      %p247 = scmp.lt.s32.totalorder %s16, 3
      %p248 = pnand %p246, %p247
      %p249 = pneg %p248
      // Predicated region
      $region45: #{psac_forward.1} parent=5 // pred_check
        _
      $region46: #{psac_forward.1} parent=5 // pred_check_branch
        %251 = sbr.rel (%p248) target = $region48
      $region47: #{psac_forward.1} parent=5 // pred_region
        %s252 = ssub.s32 %s16, 1
        %p253 = scmp.lt.s32.totalorder %s21, 1
        %s254 = scalar_select %p253, %s21, 1
        %s255 = smul.addr %s254, 4
        %s256 = scalar_lea.vmem %s0, %s255
        %p257 = pneg %p42
        %p258 = pneg %p39
        %p259 = scmp.lt.s32.totalorder %s21, 1
        %s260 = scalar_select %p259, %s21, 1
        %s261 = scalar_lea.vmem %s1, %s260
        %p262 = pneg %p68
        %p263 = pneg %p65
        %p264 = pneg %p89
        %p265 = pneg %p86
        %p266 = pneg %p110
        %p267 = pneg %p107
        %p268 = pneg %p131
        %p269 = pneg %p128
        %p270 = pneg %p152
        %p271 = pneg %p149
        %p272 = pneg %p173
        %p273 = pneg %p170
        %p274 = pneg %p199
        %p275 = pneg %p196
        %s276 = sand.u32 %s186, 1
        %s277 = scalar_lea.sflag [#allocation5], %s276
        %s278 = sand.u32 %s186, 1
        %s279 = smul.addr %s278, 4
        %s280 = scalar_lea.vmem [#allocation4], %s279
        %p281 = scmp.lt.s32.totalorder %s21, 1
        %s282 = scalar_select %p281, %s21, 1
        %s283 = smul.addr %s282, 4
        %s284 = scalar_lea.vmem %s0, %s283
        %p285 = scmp.lt.s32.totalorder %s21, 1
        %s286 = scalar_select %p285, %s21, 1
        %s287 = scalar_lea.vmem %s1, %s286
        %v288 = vld [vmem:[%s284] sm:$0xf]
        %v289 = vld [vmem:[%s2] sm:$0xff]
        %v290 = vld [vmem:[%s2 + $0x8] sm:$0xff]
        %v291 = vld [vmem:[%s2 + $0x10] sm:$0xff]
        %v292 = vld [vmem:[%s3] sm:$0x1]
        %v294 = vlaneseq
        %v295 = vshrl.u32 %v294, 7
        %v296 = vsub.s32 0, %v295
        %v297 = vrot.slane %v292, %v296
        %vm299 = vcmask 195584
        %v301 = vsel %vm299, %v288, 0
        %303 = vmatprep.subr.mxu0 0.0
        %304 = vmatpush1.msra.mxu0 0.0
        %305 = vmatprep.subr.mxu0 0.0
        %306 = vmatpush1.msra.mxu0 0.0
        %307 = vmatprep.subr.mxu0 0.0
        %308 = vmatpush1.msra.mxu0 0.0
        %309 = vmatprep.subr.mxu0 0.0
        %310 = vmatpush1.msra.mxu0 0.0
        %311 = vmatprep.subr.mxu0 0.0
        %312 = vmatpush1.msra.mxu0 0.0
        %313 = vmatprep.subr.mxu0 0.0
        %314 = vmatpush1.msra.mxu0 0.0
        %315 = vmatprep.subr.mxu0 0.0
        %316 = vmatpush1.msra.mxu0 0.0
        %317 = vmatprep.subr.mxu0 0.0
        %318 = vmatpush1.msra.mxu0 0.0
        %319 = vmatprep.subr.mxu0 0.0
        %320 = vmatpush1.msra.mxu0 0.0
        %321 = vmatprep.subr.mxu0 0.0
        %322 = vmatpush1.msra.mxu0 0.0
        %323 = vmatprep.subr.mxu0 0.0
        %324 = vmatpush1.msra.mxu0 0.0
        %325 = vmatprep.subr.mxu0 0.0
        %326 = vmatpush1.msra.mxu0 0.0
        %327 = vmatprep.subr.mxu0 0.0
        %328 = vmatpush1.msra.mxu0 0.0
        %329 = vmatprep.subr.mxu0 0.0
        %330 = vmatpush1.msra.mxu0 %v291
        %331 = vmatprep.subr.mxu0 0.0
        %332 = vmatpush1.msra.mxu0 %v290
        %333 = vmatprep.subr.mxu0 0.0
        %334 = vmatpush1.msra.mxu0 %v289
        %335 = vmatprep.subr.mxu0 0.0
        %336 = vmatpush2.msra.mxu0 0.0
        %337 = vmatprep.subr.mxu0 0.0
        %338 = vmatpush2.msra.mxu0 0.0
        %339 = vmatprep.subr.mxu0 0.0
        %340 = vmatpush2.msra.mxu0 0.0
        %341 = vmatprep.subr.mxu0 0.0
        %342 = vmatpush2.msra.mxu0 0.0
        %343 = vmatprep.subr.mxu0 0.0
        %344 = vmatpush2.msra.mxu0 0.0
        %345 = vmatprep.subr.mxu0 0.0
        %346 = vmatpush2.msra.mxu0 0.0
        %347 = vmatprep.subr.mxu0 0.0
        %348 = vmatpush2.msra.mxu0 0.0
        %349 = vmatprep.subr.mxu0 0.0
        %350 = vmatpush2.msra.mxu0 0.0
        %351 = vmatprep.subr.mxu0 0.0
        %352 = vmatpush2.msra.mxu0 0.0
        %353 = vmatprep.subr.mxu0 0.0
        %354 = vmatpush2.msra.mxu0 0.0
        %355 = vmatprep.subr.mxu0 0.0
        %356 = vmatpush2.msra.mxu0 0.0
        %357 = vmatprep.subr.mxu0 0.0
        %358 = vmatpush2.msra.mxu0 0.0
        %359 = vmatprep.subr.mxu0 0.0
        %360 = vmatpush2.msra.mxu0 0.0
        %361 = vmatprep.subr.mxu0 0.0
        %362 = vmatpush2.msra.mxu0 0.0
        %363 = vmatprep.subr.mxu0 0.0
        %364 = vmatpush2.msra.mxu0 0.0
        %365 = vmatprep.subr.mxu0 0.0
        %366 = vmatpush2.msra.mxu0 0.0
        %367 = vmatprep.mubr.f32.mxu0 0.0
        %368 = vmatmul.mubr.f32.gmra.mxu0 %v301
        %v369 = vpop.f32.mrf.mxu0
        %v370 = vadd.f32 %v297, %v369
        %v371 = vpop.f32.mrf.mxu0
        %372 = vdwg.mxu0
        %v373 = vmax.f32 %v370, 0.0
        %vm374 = vcmask 60416
        %375 = vst.msk [vmem:[#allocation2] sm:$0xf] %vm374, %v373
        %v376 = vld [vmem:[%s287] sm:$0x1]
        %v377 = vlaneseq
        %v378 = vshrl.u32 %v377, 7
        %v379 = vsub.s32 0, %v378
        %v380 = vrot.slane %v376, %v379
        %382 = vbcast.lane.b32.xlu0 %v380, 256
        %v383 = vpop.permute.xlu0 %382
        loop: start=0, step=1, limit=4
        $region49: #{psac_forward.1} parent=47 // loop_pre_header
          _
        $region50: #{psac_forward.1} parent=47 // loop_header
          %s385 = sphi 0, %s389
          %p386 = scmp.ge.s32.totalorder %s385, 4
        $region51: #{psac_forward.1} parent=47 // loop_header_branch
          %388 = sbr.rel (%p386) target = $region55
        $region52: #{psac_forward.1} parent=47 // loop_body
          %s390 = scalar_lea.vmem [#allocation2], %s385
          %v391 = vld [vmem:[%s390] sm:$0x1]
          %v392 = vlaneseq
          %v393 = vshrl.u32 %v392, 7
          %v394 = vsub.s32 0, %v393
          %v395 = vrot.slane %v391, %v394
          %v396 = vmul.f32 %v383, %v395
          %vm397 = vcmask 64512
          %v398 = vsel %vm397, %v396, -inf
          %399 = vmax.xlane.f32.xlu0 %v398
          %v400 = vpop.xlane.xlu0 %399
          %v401 = vsub.f32 %v396, %v400
          %v402 = vmul.f32 %v401, 1.442695
          %v403 = vpow.pop %v402
          %v404 = vsel %vm397, %v403, 0.0
          %405 = vadd.xlane.f32.xlu0 %v404
          %v406 = vpop.xlane.xlu0 %405
          %v407 = vrcp.pop %v406
          %v408 = vmul.f32 %v403, %v407
          %v409 = vmul.f32 %v408, %v395
          %v410 = vsel %vm397, %v409, 0.0
          %411 = vadd.xlane.f32.xlu0 %v410
          %v412 = vpop.xlane.xlu0 %411
          %v414 = vlaneseq
          %v415 = vand.u32 %v414, 127
          %v416 = vlaneseq
          %v417 = vshrl.u32 %v416, 7
          %v418 = vsub.s32 %v415, %v417
          %v419 = vrot.slane %v412, %v418
          %s421 = scalar_lea.vmem [#allocation3], %s385
          %vm422 = vcmask 57344
          %423 = vst.msk [vmem:[%s421] sm:$0x1] %vm422, %v419
        $region53: #{psac_forward.1} parent=47 // loop_footer
          %s389 = sadd.s32 1, %s385
        $region54: #{psac_forward.1} parent=47 // loop_footer_branch
          %384 = sbr.rel target = $region50
        $region55: #{psac_forward.1} parent=47 // loop_exit
          _
        %v424 = vld [vmem:[%s4] sm:$0xff]
        %vm425 = vcmask 64512
        %v427 = vsel %vm425, %v376, 0
        %429 = vmatprep.subr.mxu0 0.0
        %430 = vmatpush1.msra.mxu0 0.0
        %431 = vmatprep.subr.mxu0 0.0
        %432 = vmatpush1.msra.mxu0 0.0
        %433 = vmatprep.subr.mxu0 0.0
        %434 = vmatpush1.msra.mxu0 0.0
        %435 = vmatprep.subr.mxu0 0.0
        %436 = vmatpush1.msra.mxu0 0.0
        %437 = vmatprep.subr.mxu0 0.0
        %438 = vmatpush1.msra.mxu0 0.0
        %439 = vmatprep.subr.mxu0 0.0
        %440 = vmatpush1.msra.mxu0 0.0
        %441 = vmatprep.subr.mxu0 0.0
        %442 = vmatpush1.msra.mxu0 0.0
        %443 = vmatprep.subr.mxu0 0.0
        %444 = vmatpush1.msra.mxu0 0.0
        %445 = vmatprep.subr.mxu0 0.0
        %446 = vmatpush1.msra.mxu0 0.0
        %447 = vmatprep.subr.mxu0 0.0
        %448 = vmatpush1.msra.mxu0 0.0
        %449 = vmatprep.subr.mxu0 0.0
        %450 = vmatpush1.msra.mxu0 0.0
        %451 = vmatprep.subr.mxu0 0.0
        %452 = vmatpush1.msra.mxu0 0.0
        %453 = vmatprep.subr.mxu0 0.0
        %454 = vmatpush1.msra.mxu0 0.0
        %455 = vmatprep.subr.mxu0 0.0
        %456 = vmatpush1.msra.mxu0 0.0
        %457 = vmatprep.subr.mxu0 0.0
        %458 = vmatpush1.msra.mxu0 0.0
        %459 = vmatprep.subr.mxu0 0.0
        %460 = vmatpush1.msra.mxu0 %v424
        %461 = vmatprep.subr.mxu0 0.0
        %462 = vmatpush2.msra.mxu0 0.0
        %463 = vmatprep.subr.mxu0 0.0
        %464 = vmatpush2.msra.mxu0 0.0
        %465 = vmatprep.subr.mxu0 0.0
        %466 = vmatpush2.msra.mxu0 0.0
        %467 = vmatprep.subr.mxu0 0.0
        %468 = vmatpush2.msra.mxu0 0.0
        %469 = vmatprep.subr.mxu0 0.0
        %470 = vmatpush2.msra.mxu0 0.0
        %471 = vmatprep.subr.mxu0 0.0
        %472 = vmatpush2.msra.mxu0 0.0
        %473 = vmatprep.subr.mxu0 0.0
        %474 = vmatpush2.msra.mxu0 0.0
        %475 = vmatprep.subr.mxu0 0.0
        %476 = vmatpush2.msra.mxu0 0.0
        %477 = vmatprep.subr.mxu0 0.0
        %478 = vmatpush2.msra.mxu0 0.0
        %479 = vmatprep.subr.mxu0 0.0
        %480 = vmatpush2.msra.mxu0 0.0
        %481 = vmatprep.subr.mxu0 0.0
        %482 = vmatpush2.msra.mxu0 0.0
        %483 = vmatprep.subr.mxu0 0.0
        %484 = vmatpush2.msra.mxu0 0.0
        %485 = vmatprep.subr.mxu0 0.0
        %486 = vmatpush2.msra.mxu0 0.0
        %487 = vmatprep.subr.mxu0 0.0
        %488 = vmatpush2.msra.mxu0 0.0
        %489 = vmatprep.subr.mxu0 0.0
        %490 = vmatpush2.msra.mxu0 0.0
        %491 = vmatprep.subr.mxu0 0.0
        %492 = vmatpush2.msra.mxu0 0.0
        %493 = vmatprep.mubr.f32.mxu0 0.0
        %494 = vmatmul.mubr.f32.gmra.mxu0 %v427
        %v495 = vpop.f32.mrf.mxu0
        %v496 = vadd.f32 0.0, %v495
        %v497 = vpop.f32.mrf.mxu0
        %498 = vdwg.mxu0
        %v499 = vld [vmem:[#allocation3] sm:$0xf]
        %v500 = vld [vmem:[%s5] sm:$0xff]
        %v502 = vsel %vm425, %v499, 0
        %504 = vmatprep.subr.mxu0 0.0
        %505 = vmatpush1.msra.mxu0 0.0
        %506 = vmatprep.subr.mxu0 0.0
        %507 = vmatpush1.msra.mxu0 0.0
        %508 = vmatprep.subr.mxu0 0.0
        %509 = vmatpush1.msra.mxu0 0.0
        %510 = vmatprep.subr.mxu0 0.0
        %511 = vmatpush1.msra.mxu0 0.0
        %512 = vmatprep.subr.mxu0 0.0
        %513 = vmatpush1.msra.mxu0 0.0
        %514 = vmatprep.subr.mxu0 0.0
        %515 = vmatpush1.msra.mxu0 0.0
        %516 = vmatprep.subr.mxu0 0.0
        %517 = vmatpush1.msra.mxu0 0.0
        %518 = vmatprep.subr.mxu0 0.0
        %519 = vmatpush1.msra.mxu0 0.0
        %520 = vmatprep.subr.mxu0 0.0
        %521 = vmatpush1.msra.mxu0 0.0
        %522 = vmatprep.subr.mxu0 0.0
        %523 = vmatpush1.msra.mxu0 0.0
        %524 = vmatprep.subr.mxu0 0.0
        %525 = vmatpush1.msra.mxu0 0.0
        %526 = vmatprep.subr.mxu0 0.0
        %527 = vmatpush1.msra.mxu0 0.0
        %528 = vmatprep.subr.mxu0 0.0
        %529 = vmatpush1.msra.mxu0 0.0
        %530 = vmatprep.subr.mxu0 0.0
        %531 = vmatpush1.msra.mxu0 0.0
        %532 = vmatprep.subr.mxu0 0.0
        %533 = vmatpush1.msra.mxu0 0.0
        %534 = vmatprep.subr.mxu0 0.0
        %535 = vmatpush1.msra.mxu0 %v500
        %536 = vmatprep.subr.mxu0 0.0
        %537 = vmatpush2.msra.mxu0 0.0
        %538 = vmatprep.subr.mxu0 0.0
        %539 = vmatpush2.msra.mxu0 0.0
        %540 = vmatprep.subr.mxu0 0.0
        %541 = vmatpush2.msra.mxu0 0.0
        %542 = vmatprep.subr.mxu0 0.0
        %543 = vmatpush2.msra.mxu0 0.0
        %544 = vmatprep.subr.mxu0 0.0
        %545 = vmatpush2.msra.mxu0 0.0
        %546 = vmatprep.subr.mxu0 0.0
        %547 = vmatpush2.msra.mxu0 0.0
        %548 = vmatprep.subr.mxu0 0.0
        %549 = vmatpush2.msra.mxu0 0.0
        %550 = vmatprep.subr.mxu0 0.0
        %551 = vmatpush2.msra.mxu0 0.0
        %552 = vmatprep.subr.mxu0 0.0
        %553 = vmatpush2.msra.mxu0 0.0
        %554 = vmatprep.subr.mxu0 0.0
        %555 = vmatpush2.msra.mxu0 0.0
        %556 = vmatprep.subr.mxu0 0.0
        %557 = vmatpush2.msra.mxu0 0.0
        %558 = vmatprep.subr.mxu0 0.0
        %559 = vmatpush2.msra.mxu0 0.0
        %560 = vmatprep.subr.mxu0 0.0
        %561 = vmatpush2.msra.mxu0 0.0
        %562 = vmatprep.subr.mxu0 0.0
        %563 = vmatpush2.msra.mxu0 0.0
        %564 = vmatprep.subr.mxu0 0.0
        %565 = vmatpush2.msra.mxu0 0.0
        %566 = vmatprep.subr.mxu0 0.0
        %567 = vmatpush2.msra.mxu0 0.0
        %568 = vmatprep.mubr.f32.mxu0 0.0
        %569 = vmatmul.mubr.f32.gmra.mxu0 %v502
        %v570 = vpop.f32.mrf.mxu0
        %v571 = vadd.f32 0.0, %v570
        %v572 = vpop.f32.mrf.mxu0
        %573 = vdwg.mxu0
        %v574 = vlaneseq
        %v575 = vshrl.u32 %v574, 7
        %v576 = vsub.s32 0, %v575
        %v577 = vrot.slane %v496, %v576
        %v578 = vadd.f32 %v577, %v571
        %v579 = vld [vmem:[%s6] sm:$0x1]
        %v581 = vlaneseq
        %v582 = vshrl.u32 %v581, 7
        %v583 = vsub.s32 0, %v582
        %v584 = vrot.slane %v579, %v583
        %v586 = vadd.f32 %v578, %v584
        %vm587 = vcmask 257024
        %588 = vst.msk [vmem:[%s280] sm:$0xf] %vm587, %v586
        %s589 = sand.u32 %s186, 1
        %s590 = scalar_lea.sflag [#allocation5], %s589
        %s591 = sand.u32 %s186, 1
        %s592 = smul.addr %s591, 4
        %s593 = scalar_lea.vmem [#allocation4], %s592
        // Predicated region
        $region56: #{psac_forward.1} parent=47 // pred_check
          %p594 = pneg %p196
        $region57: #{psac_forward.1} parent=47 // pred_check_branch
          %596 = sbr.rel (%p594) target = $region59
        $region58: #{psac_forward.1} parent=47 // pred_region
          %s598 = ssub.s32 64, 64
          %599 = vsyncadd %s590, %s598
          %s600 = smul.addr %s21, 64
          %s601 = scalar_lea.hbm %s7, %s600
          %s603 = sshll.u32 %s593, 4
          %s604 = int_to_ptr.vmem [resolvable:$true] %s603
          %606 = dma.vmem_to_hbm [thread:$0]  %s604, 64, %s601, %s590
        $region59: #{psac_forward.1} parent=47 // pred_fallthru
          _
      $region48: #{psac_forward.1} parent=5 // pred_fallthru
        _
      %p607 = scmp.le.s32.totalorder 2, %s16
      // Predicated region
      $region60: #{psac_forward.1} parent=5 // pred_check
        %p608 = pneg %p607
      $region61: #{psac_forward.1} parent=5 // pred_check_branch
        %610 = sbr.rel (%p608) target = $region63
      $region62: #{psac_forward.1} parent=5 // pred_region
        %s611 = ssub.s32 %s16, 2
        // Predicated region
        $region64: #{psac_forward.1} parent=62 // pred_check
          %p612 = pneg %p202
        $region65: #{psac_forward.1} parent=62 // pred_check_branch
          %614 = sbr.rel (%p612) target = $region67
        $region66: #{psac_forward.1} parent=62 // pred_region
          %s615 = sand.u32 %s187, 1
          %s616 = scalar_lea.sflag [#allocation5], %s615
          %s617 = sand.u32 %s187, 1
          %s618 = smul.addr %s617, 4
          %s619 = scalar_lea.vmem [#allocation4], %s618
          %620 = dma.done %s616, 64
        $region67: #{psac_forward.1} parent=62 // pred_fallthru
          _
      $region63: #{psac_forward.1} parent=5 // pred_fallthru
        _
    $region6: #{psac_forward.1} parent=1 // loop_footer
      %s20 = sadd.s32 1, %s16
    $region7: #{psac_forward.1} parent=1 // loop_footer_branch
      %15 = sbr.rel target = $region3
    $region8: #{psac_forward.1} parent=1 // loop_exit
      _
    %621 = vsyncpa [#allocation5], 1
    %s622 = scalar_lea.sflag [#allocation5], 1
    %623 = vsyncpa %s622, 1

</llo_original>
